<compile_context>
chip_gen: v7x
topology: tpu7x:2x2x1
jax: 0.10.0
libtpu: 0.0.40
codegen_flags: <defaults>
</compile_context>

<pallas_src>
import functools

import jax
import jax.numpy as jnp
from jax import lax
from jax.experimental import pallas as pl
from jax.experimental.pallas import tpu as pltpu


def _round_up(x, m):
    return ((x + m - 1) // m) * m


def _embedding_kernel(idx_ref, wbd_ref, out_ref, *, max_dim):
    # idx_ref : (TB, n_feat)                          int32
    # wbd_ref : (n_feat*max_dim, n_feat*embed_dim)    bf16 (block-diagonal tables)
    # out_ref : (TB, n_feat*embed_dim)                bf16 (or f32)
    tb, n_feat = idx_ref.shape
    k_dim = wbd_ref.shape[0]

    # Clamp so a bad index can only land in a zero-padded row of its own table,
    # never in another feature's diagonal block (see perf-review correctness note).
    idx = jnp.clip(idx_ref[...], 0, max_dim - 1)  # (TB, n_feat)

    # Shift each feature's index into its slot of the concatenated vocab axis:
    # feature f's valid range becomes [f*max_dim, (f+1)*max_dim).
    feat_off = lax.broadcasted_iota(jnp.int32, (tb, n_feat), 1) * max_dim
    shifted = idx + feat_off  # (TB, n_feat)

    # Build the (TB, K) one-hot over the concatenated vocab axis.
    # Boolean OR-accumulation over a static feature unroll; one cast at the end.
    lane = lax.broadcasted_iota(jnp.int32, (tb, k_dim), 1)
    hit = lane == shifted[:, 0:1]
    for f in range(1, n_feat):  # static Python unroll; n_feat is small
        hit = jnp.logical_or(hit, lane == shifted[:, f:f + 1])
    onehot = hit.astype(wbd_ref.dtype)  # 0/1 exact in bf16

    # Single MXU matmul (bf16 x bf16 -> f32 accumulate) produces the full
    # concatenated output row block; one unmasked lane-dense store.
    out_ref[...] = jnp.dot(
        onehot, wbd_ref[...], preferred_element_type=jnp.float32
    ).astype(out_ref.dtype)


def categorical_embedding(
    x_cat,
    w_bd,
    *,
    block_b=1024,
    out_dtype=jnp.bfloat16,
    vmem_budget_bytes=48 * 1024 * 1024,
):
    """x_cat: (B, n_feat) int32; w_bd: (n_feat*max_dim, n_feat*embed_dim)."""
    B, n_feat = x_cat.shape
    k_dim, n_out = w_bd.shape
    assert k_dim % n_feat == 0
    max_dim = k_dim // n_feat

    w_itemsize = jnp.dtype(w_bd.dtype).itemsize
    out_itemsize = jnp.dtype(out_dtype).itemsize

    # Sublane packing of the output dtype decides row alignment (16 for bf16).
    row_align = {1: 32, 2: 16, 4: 8}.get(out_itemsize, 8)

    # Pad the batch only to the sublane-packing multiple (padding rows use
    # index 0 and are sliced off below); the grid handles partial tiles.
    b_pad = _round_up(B, row_align)
    if b_pad != B:
        x_cat = jnp.pad(x_cat, ((0, b_pad - B), (0, 0)))

    # --- VMEM budgeting -----------------------------------------------------
    # Single-buffered weight + double-buffered idx/out tiles + in-kernel
    # one-hot / f32-accumulator intermediates.
    w_bytes = k_dim * n_out * w_itemsize  # pl.Buffered(1) -> one copy
    per_row = (
        2 * n_feat * 4                    # idx tile (double-buffered)
        + 2 * n_out * out_itemsize        # out tile (double-buffered)
        + k_dim * (4 + w_itemsize)        # lane iota / bool + bf16 one-hot
        + n_out * 4                       # f32 matmul result before cast
    )
    avail = vmem_budget_bytes - w_bytes
    assert avail > per_row * row_align, (
        "block-diagonal weight alone exceeds the VMEM budget; "
        "use the per-feature einsum / gather design instead (see TODO)."
    )
    tb = min(block_b, b_pad, max(row_align, (avail // per_row) // row_align * row_align))
    # v7x has 2 TensorCores: keep >= 2 batch tiles whenever the batch allows it
    # so the "parallel" grid axis can be sharded (harmless on v5e/v6e).
    if b_pad >= 2 * row_align:
        tb = min(tb, _round_up((b_pad + 1) // 2, row_align))
    tb = max(tb, row_align)

    grid = (pl.cdiv(b_pad, tb),)

    kernel = functools.partial(_embedding_kernel, max_dim=max_dim)

    out = pl.pallas_call(
        kernel,
        out_shape=jax.ShapeDtypeStruct((b_pad, n_out), out_dtype),
        grid=grid,
        in_specs=[
            # One batch tile of indices per grid step.
            pl.BlockSpec((tb, n_feat), lambda b: (b, 0)),
            # Block-diagonal weight: constant index_map -> DMA'd once and kept
            # resident; single-buffered to avoid a wasted second VMEM copy.
            pl.BlockSpec(
                (k_dim, n_out), lambda b: (0, 0), pipeline_mode=pl.Buffered(1)
            ),
        ],
        # Full-width, lane-dense output row block.
        out_specs=pl.BlockSpec((tb, n_out), lambda b: (b, 0)),
        compiler_params=pltpu.CompilerParams(
            dimension_semantics=("parallel",),
            vmem_limit_bytes=vmem_budget_bytes,
        ),
    )(x_cat, w_bd)

    return out[:B]


def init_params(key, cat_dims, embed_dim, *, w_dtype=jnp.bfloat16):
    """N(0,1) init (matches nn.Embedding default), packed block-diagonally.

    Returns:
      w_bd       : (n_feat*max_dim, n_feat*embed_dim) block-diagonal weight (w_dtype)
      per_tables : list of raw (dim_i, embed_dim) f32 tables (for the reference)
      max_dim    : padded per-feature vocab size
    """
    n_feat = len(cat_dims)
    max_dim = _round_up(max(cat_dims), 16)  # sublane-tidy for bf16 packing
    k_dim = n_feat * max_dim
    n_out = n_feat * embed_dim

    w_bd = jnp.zeros((k_dim, n_out), jnp.float32)
    per_tables = []
    for i, dim in enumerate(cat_dims):
        k = jax.random.fold_in(key, i)
        t = jax.random.normal(k, (dim, embed_dim), dtype=jnp.float32)
        per_tables.append(t)
        w_bd = w_bd.at[
            i * max_dim: i * max_dim + dim,
            i * embed_dim: (i + 1) * embed_dim,
        ].set(t)
    return w_bd.astype(w_dtype), per_tables, max_dim


if __name__ == "__main__":
    key = jax.random.PRNGKey(0)

    # Small shapes consistent with the module.
    cat_dims = [5, 7, 3, 11]  # vocab size per categorical feature
    embed_dim = 128
    B = 8
    n_feat = len(cat_dims)

    w_bd, per_tables, max_dim = init_params(key, cat_dims, embed_dim)

    # Integer categorical inputs, each column bounded by its cat_dim.
    idx_cols = []
    for i, dim in enumerate(cat_dims):
        k = jax.random.fold_in(jax.random.PRNGKey(1), i)
        idx_cols.append(jax.random.randint(k, (B,), 0, dim, dtype=jnp.int32))
    x_cat = jnp.stack(idx_cols, axis=1)  # (B, n_feat) int32

    out = categorical_embedding(x_cat, w_bd)
    out = jax.block_until_ready(out)

    # Pure-JAX reference: per-feature gather then concat along dim=1.
    # The kernel stores bf16 tables, so compare against bf16-rounded tables
    # (the gather itself is exact: a single 1.0 * w term per output element).
    ref = jnp.concatenate(
        [
            jnp.take(per_tables[i].astype(jnp.bfloat16), x_cat[:, i], axis=0)
            for i in range(n_feat)
        ],
        axis=1,
    )

    assert out.shape == (B, n_feat * embed_dim), out.shape
    assert jnp.allclose(
        out.astype(jnp.float32), ref.astype(jnp.float32), atol=1e-6, rtol=1e-6
    ), "mismatch vs reference"

    print("KERNEL_OK")
</pallas_src>

<mosaic_0001>
module attributes {stable_mosaic.version = 11 : i64} {
  func.func @_embedding_kernel(%arg0: i32, %arg1: memref<16x4xi32, #tpu.memory_space<vmem>>, %arg2: memref<64x512xbf16, #tpu.memory_space<vmem>>, %arg3: memref<16x512xbf16, #tpu.memory_space<vmem>>) attributes {dimension_semantics = [#tpu.dimension_semantics<parallel>], iteration_bounds = array<i64: 1>, scalar_prefetch = 0 : i64, scratch_operands = 0 : i64, tpu.core_type = #tpu.core_type<tc>, window_params = [{transform_indices = @transform_0, window_bounds = array<i64: 16, 4>}, {pipeline_mode = #tpu.pipeline_mode<synchronous>, transform_indices = @transform_1, window_bounds = array<i64: 64, 512>}, {transform_indices = @transform_2, window_bounds = array<i64: 16, 512>}]} {
    %c0 = arith.constant 0 : index
    %c0_0 = arith.constant 0 : index
    %0 = vector.load %arg1[%c0, %c0_0] : memref<16x4xi32, #tpu.memory_space<vmem>>, vector<16x4xi32>
    %c0_i32 = arith.constant 0 : i32
    %c15_i32 = arith.constant 15 : i32
    %1 = vector.broadcast %c0_i32 : i32 to vector<16x4xi32>
    %2 = arith.maxsi %1, %0 : vector<16x4xi32>
    %3 = vector.broadcast %c15_i32 : i32 to vector<16x4xi32>
    %4 = arith.minsi %3, %2 : vector<16x4xi32>
    %5 = tpu.iota {dimensions = array<i32: 1>} : vector<16x4xi32>
    %c16_i32 = arith.constant 16 : i32
    %6 = vector.broadcast %c16_i32 : i32 to vector<16x4xi32>
    %7 = arith.muli %5, %6 : vector<16x4xi32>
    %8 = arith.addi %4, %7 : vector<16x4xi32>
    %9 = tpu.iota {dimensions = array<i32: 1>} : vector<16x64xi32>
    %10 = vector.extract_strided_slice %8 {offsets = [0, 0], sizes = [16, 1], strides = [1, 1]} : vector<16x4xi32> to vector<16x1xi32>
    %11 = vector.broadcast %10 : vector<16x1xi32> to vector<16x64xi32>
    %12 = arith.cmpi eq, %9, %11 : vector<16x64xi32>
    %13 = vector.extract_strided_slice %8 {offsets = [0, 1], sizes = [16, 1], strides = [1, 1]} : vector<16x4xi32> to vector<16x1xi32>
    %14 = vector.broadcast %13 : vector<16x1xi32> to vector<16x64xi32>
    %15 = arith.cmpi eq, %9, %14 : vector<16x64xi32>
    %16 = arith.ori %12, %15 : vector<16x64xi1>
    %17 = vector.extract_strided_slice %8 {offsets = [0, 2], sizes = [16, 1], strides = [1, 1]} : vector<16x4xi32> to vector<16x1xi32>
    %18 = vector.broadcast %17 : vector<16x1xi32> to vector<16x64xi32>
    %19 = arith.cmpi eq, %9, %18 : vector<16x64xi32>
    %20 = arith.ori %16, %19 : vector<16x64xi1>
    %21 = vector.extract_strided_slice %8 {offsets = [0, 3], sizes = [16, 1], strides = [1, 1]} : vector<16x4xi32> to vector<16x1xi32>
    %22 = vector.broadcast %21 : vector<16x1xi32> to vector<16x64xi32>
    %23 = arith.cmpi eq, %9, %22 : vector<16x64xi32>
    %24 = arith.ori %20, %23 : vector<16x64xi1>
    %25 = arith.extui %24 : vector<16x64xi1> to vector<16x64xi32>
    %26 = arith.sitofp %25 : vector<16x64xi32> to vector<16x64xf32>
    %27 = arith.truncf %26 : vector<16x64xf32> to vector<16x64xbf16>
    %c0_1 = arith.constant 0 : index
    %c0_2 = arith.constant 0 : index
    %28 = vector.load %arg2[%c0_1, %c0_2] : memref<64x512xbf16, #tpu.memory_space<vmem>>, vector<64x512xbf16>
    %cst = arith.constant dense<0.000000e+00> : vector<16x512xf32>
    %29 = tpu.matmul %27, %28, %cst {dimension_numbers = #tpu.dot_dimension_numbers<[1], [0], [0], [1], [0, 0, 1, 1], [], []>} : vector<16x64xbf16>, vector<64x512xbf16>, vector<16x512xf32> -> vector<16x512xf32>
    %30 = arith.truncf %29 : vector<16x512xf32> to vector<16x512xbf16>
    %c0_3 = arith.constant 0 : index
    %c0_4 = arith.constant 0 : index
    %31 = vector.load %arg3[%c0_3, %c0_4] : memref<16x512xbf16, #tpu.memory_space<vmem>>, vector<16x512xbf16>
    tpu.vector_store %arg3[%c0_3, %c0_4], %30 {strides = array<i32>} : memref<16x512xbf16, #tpu.memory_space<vmem>>, vector<16x512xbf16>,
    return
  }
  func.func @transform_0(%arg0: i32) -> (i32, i32) {
    %c0_i32 = arith.constant 0 : i32
    %c0_i32_0 = arith.constant 0 : i32
    return %arg0, %c0_i32 : i32, i32
  }
  func.func @transform_1(%arg0: i32) -> (i32, i32) {
    %c0_i32 = arith.constant 0 : i32
    %c0_i32_0 = arith.constant 0 : i32
    %c0_i32_1 = arith.constant 0 : i32
    return %c0_i32, %c0_i32_0 : i32, i32
  }
  func.func @transform_2(%arg0: i32) -> (i32, i32) {
    %c0_i32 = arith.constant 0 : i32
    %c0_i32_0 = arith.constant 0 : i32
    return %arg0, %c0_i32 : i32, i32
  }
}

</mosaic_0001>

<llo_original>
// kernel: tpu_custom_call.1
$region0: #{tpu_custom_call.1}
  #allocation0 [shape = 'u32[]', space=smem, size = 0x4, offset = 0x4, fixed_abs, tag = 'smem constant byte address 0x4 - core index']
  #allocation1 [shape = 'u32[144,128]{1,0:T(1,128)}', space=vmem, size = 0x12000, scoped, tag = 'internal scratch']
  %s0 = inlined_call_operand.vmem [shape: s32[16,4], index: 0, kind: input, shape index: {}]
  %s1 = inlined_call_operand.hbm [shape: bf16[64,512], index: 1, kind: input, shape index: {}]
  %s2 = inlined_call_operand.hbm [shape: bf16[16,512], index: 2, kind: output, shape index: {}]
  %s3 = sld [smem:[#allocation0]]
  $region22: #{tpu_custom_call.1} parent=0
    _
  %s5 = ssub.s32 1, %s3
  %s6 = scalar_select 0, %s5, %s3
  $region1: #{tpu_custom_call.1} parent=0
    #allocation2 [shape = 'u8[65536]{0}', space=vmem, size = 0x10000, scoped, tag = 'input window, operand 1, single buffered']
    #allocation3 [shape = 's32[1]{0}', space=sflag, size = 0x4, scoped, tag = 'scoped memory for tpu_custom_call.1']
    #allocation4 [shape = 's32[1]{0}', space=sflag, size = 0x4, scoped, tag = 'scoped memory for tpu_custom_call.1']
    #allocation5 [shape = 'u8[16384]{0}', space=vmem, size = 0x4000, scoped, tag = 'output window, operand 0, single buffered']
    %7 = vsyncpa [#allocation3], 0
    %8 = vsyncpa [#allocation4], 0
    // Predicated region
    $region2: #{tpu_custom_call.1} parent=1 // pred_check
      _
    $region3: #{tpu_custom_call.1} parent=1 // pred_check_branch
      %10 = sbr.rel (0) target = $region5
    $region4: #{tpu_custom_call.1} parent=1 // pred_region
      _
    $region5: #{tpu_custom_call.1} parent=1 // pred_fallthru
      _
    // Predicated region
    $region6: #{tpu_custom_call.1} parent=1 // pred_check
      _
    $region7: #{tpu_custom_call.1} parent=1 // pred_check_branch
      %12 = sbr.rel (0) target = $region9
    $region8: #{tpu_custom_call.1} parent=1 // pred_region
      %s14 = ssub.s32 2048, 2048
      %15 = vsyncadd [#allocation3], %s14
      %s16 = sshll.u32 [#allocation2], 4
      %s17 = int_to_ptr.vmem [resolvable:$true] %s16
      %22 = dma.hbm_to_vmem [thread:$0]  %s1, 2048, %s17, [#allocation3], 256, 256, 16
    $region9: #{tpu_custom_call.1} parent=1 // pred_fallthru
      _
    // Predicated region
    $region10: #{tpu_custom_call.1} parent=1 // pred_check
      _
    $region11: #{tpu_custom_call.1} parent=1 // pred_check_branch
      %24 = sbr.rel (0) target = $region13
    $region12: #{tpu_custom_call.1} parent=1 // pred_region
      %25 = dma.done [#allocation3], 2048
    $region13: #{tpu_custom_call.1} parent=1 // pred_fallthru
      _
    %v27 = vld [vmem:[%s0] sm:$0xff]
    %v28 = vld [vmem:[%s0 + $0x8] sm:$0xff]
    %vm29 = vcmp.gt.s32.totalorder %v27, 0
    %v30 = vsel %vm29, %v27, 0
    %vm31 = vcmp.gt.s32.totalorder %v28, 0
    %v32 = vsel %vm31, %v28, 0
    %vm33 = vcmp.lt.s32.totalorder %v30, 15
    %v34 = vsel %vm33, %v30, 15
    %vm35 = vcmp.lt.s32.totalorder %v32, 15
    %v36 = vsel %vm35, %v32, 15
    %v37 = vlaneseq
    %v38 = vand.u32 %v37, 127
    %v39 = vmul.u32 %v38, 16
    %v40 = vadd.s32 %v34, %v39
    %v41 = vadd.s32 %v36, %v39
    %42 = vset.pattern.permute.xlu0 0
    %43 = vperm.xlu0 %42, %v40
    %v44 = vpop.permute.xlu0 %43
    %45 = vset.pattern.permute.xlu0 0
    %46 = vperm.xlu0 %45, %v41
    %v47 = vpop.permute.xlu0 %46
    %vm48 = vcmp.eq.s32.totalorder %v38, %v44
    %vm49 = vcmp.eq.s32.totalorder %v38, %v47
    %50 = vset.pattern.permute.xlu0 1
    %51 = vperm.xlu0 %50, %v40
    %v52 = vpop.permute.xlu0 %51
    %53 = vset.pattern.permute.xlu0 1
    %54 = vperm.xlu0 %53, %v41
    %v55 = vpop.permute.xlu0 %54
    %vm56 = vcmp.eq.s32.totalorder %v38, %v52
    %vm57 = vcmp.eq.s32.totalorder %v38, %v55
    %vm58 = vmor %vm48, %vm56
    %vm59 = vmor %vm49, %vm57
    %60 = vset.pattern.permute.xlu0 2
    %61 = vperm.xlu0 %60, %v40
    %v62 = vpop.permute.xlu0 %61
    %63 = vset.pattern.permute.xlu0 2
    %64 = vperm.xlu0 %63, %v41
    %v65 = vpop.permute.xlu0 %64
    %vm66 = vcmp.eq.s32.totalorder %v38, %v62
    %vm67 = vcmp.eq.s32.totalorder %v38, %v65
    %vm68 = vmor %vm58, %vm66
    %vm69 = vmor %vm59, %vm67
    %70 = vset.pattern.permute.xlu0 3
    %71 = vperm.xlu0 %70, %v40
    %v72 = vpop.permute.xlu0 %71
    %73 = vset.pattern.permute.xlu0 3
    %74 = vperm.xlu0 %73, %v41
    %v75 = vpop.permute.xlu0 %74
    %vm76 = vcmp.eq.s32.totalorder %v38, %v72
    %vm77 = vcmp.eq.s32.totalorder %v38, %v75
    %vm78 = vmor %vm68, %vm76
    %vm79 = vmor %vm69, %vm77
    %v80 = vsel %vm78, 1, 0
    %v81 = vsel %vm79, 1, 0
    %v82 = vcvt.s32.f32 %v80
    %v83 = vcvt.s32.f32 %v81
    %v84 = vpack.c.bf16 %v83, %v82
    %v85 = vld [vmem:[#allocation2] sm:$0xff]
    %v86 = vld [vmem:[#allocation2 + $0x8] sm:$0xff]
    %v87 = vld [vmem:[#allocation2 + $0x10] sm:$0xff]
    %v88 = vld [vmem:[#allocation2 + $0x18] sm:$0xff]
    %v89 = vld [vmem:[#allocation2 + $0x20] sm:$0xff]
    %v90 = vld [vmem:[#allocation2 + $0x28] sm:$0xff]
    %v91 = vld [vmem:[#allocation2 + $0x30] sm:$0xff]
    %v92 = vld [vmem:[#allocation2 + $0x38] sm:$0xff]
    %v93 = vld [vmem:[#allocation2 + $0x40] sm:$0xff]
    %v94 = vld [vmem:[#allocation2 + $0x48] sm:$0xff]
    %v95 = vld [vmem:[#allocation2 + $0x50] sm:$0xff]
    %v96 = vld [vmem:[#allocation2 + $0x58] sm:$0xff]
    %v97 = vld [vmem:[#allocation2 + $0x60] sm:$0xff]
    %v98 = vld [vmem:[#allocation2 + $0x68] sm:$0xff]
    %v99 = vld [vmem:[#allocation2 + $0x70] sm:$0xff]
    %v100 = vld [vmem:[#allocation2 + $0x78] sm:$0xff]
    %v117 = vunpack.c.l.b16 %v85
    %v118 = vunpack.c.h.b16 %v85
    %v119 = vunpack.c.l.b16 %v86
    %v120 = vunpack.c.h.b16 %v86
    %v121 = vunpack.c.l.b16 %v87
    %v122 = vunpack.c.h.b16 %v87
    %v123 = vunpack.c.l.b16 %v88
    %v124 = vunpack.c.h.b16 %v88
    %v125 = vunpack.c.l.b16 %v89
    %v126 = vunpack.c.h.b16 %v89
    %v127 = vunpack.c.l.b16 %v90
    %v128 = vunpack.c.h.b16 %v90
    %v129 = vunpack.c.l.b16 %v91
    %v130 = vunpack.c.h.b16 %v91
    %v131 = vunpack.c.l.b16 %v92
    %v132 = vunpack.c.h.b16 %v92
    %v133 = vunpack.c.l.b16 %v93
    %v134 = vunpack.c.h.b16 %v93
    %v135 = vunpack.c.l.b16 %v94
    %v136 = vunpack.c.h.b16 %v94
    %v137 = vunpack.c.l.b16 %v95
    %v138 = vunpack.c.h.b16 %v95
    %v139 = vunpack.c.l.b16 %v96
    %v140 = vunpack.c.h.b16 %v96
    %v141 = vunpack.c.l.b16 %v97
    %v142 = vunpack.c.h.b16 %v97
    %v143 = vunpack.c.l.b16 %v98
    %v144 = vunpack.c.h.b16 %v98
    %v145 = vunpack.c.l.b16 %v99
    %v146 = vunpack.c.h.b16 %v99
    %v147 = vunpack.c.l.b16 %v100
    %v148 = vunpack.c.h.b16 %v100
    %v149 = vpack.c.b16 %v121, %v117
    %v150 = vpack.c.b16 %v122, %v118
    %v151 = vpack.c.b16 %v123, %v119
    %v152 = vpack.c.b16 %v124, %v120
    %v153 = vpack.c.b16 %v129, %v125
    %v154 = vpack.c.b16 %v130, %v126
    %v155 = vpack.c.b16 %v131, %v127
    %v156 = vpack.c.b16 %v132, %v128
    %v157 = vpack.c.b16 %v137, %v133
    %v158 = vpack.c.b16 %v138, %v134
    %v159 = vpack.c.b16 %v139, %v135
    %v160 = vpack.c.b16 %v140, %v136
    %v161 = vpack.c.b16 %v145, %v141
    %v162 = vpack.c.b16 %v146, %v142
    %v163 = vpack.c.b16 %v147, %v143
    %v164 = vpack.c.b16 %v148, %v144
    %vm181 = vcmask 523264
    %v183 = vsel %vm181, %v84, 0
    %185 = vmatprep.subr.bf16.mxu0 %v150
    %186 = vmatpush1.bf16.msra.mxu0 %v149
    %187 = vmatprep.subr.bf16.mxu0 %v154
    %188 = vmatpush1.bf16.msra.mxu0 %v153
    %189 = vmatprep.subr.bf16.mxu0 %v158
    %190 = vmatpush1.bf16.msra.mxu0 %v157
    %191 = vmatprep.subr.bf16.mxu0 %v162
    %192 = vmatpush1.bf16.msra.mxu0 %v161
    %193 = vmatprep.subr.bf16.mxu0 0
    %194 = vmatpush1.bf16.msra.mxu0 0
    %195 = vmatprep.subr.bf16.mxu0 0
    %196 = vmatpush1.bf16.msra.mxu0 0
    %197 = vmatprep.subr.bf16.mxu0 0
    %198 = vmatpush1.bf16.msra.mxu0 0
    %199 = vmatprep.subr.bf16.mxu0 0
    %200 = vmatpush1.bf16.msra.mxu0 0
    %201 = vmatprep.subr.bf16.mxu0 0
    %202 = vmatpush1.bf16.msra.mxu0 0
    %203 = vmatprep.subr.bf16.mxu0 0
    %204 = vmatpush1.bf16.msra.mxu0 0
    %205 = vmatprep.subr.bf16.mxu0 0
    %206 = vmatpush1.bf16.msra.mxu0 0
    %207 = vmatprep.subr.bf16.mxu0 0
    %208 = vmatpush1.bf16.msra.mxu0 0
    %209 = vmatprep.subr.bf16.mxu0 0
    %210 = vmatpush1.bf16.msra.mxu0 0
    %211 = vmatprep.subr.bf16.mxu0 0
    %212 = vmatpush1.bf16.msra.mxu0 0
    %213 = vmatprep.subr.bf16.mxu0 0
    %214 = vmatpush1.bf16.msra.mxu0 0
    %215 = vmatprep.subr.bf16.mxu0 0
    %216 = vmatpush1.bf16.msra.mxu0 0
    %217 = vmatprep.mubr.bf16.mxu0 0
    %218 = vmatmul.mubr.bf16.gmra.mrb[0].mxu0 %v183
    %v219 = vpop.f32.mrb[0].mxu0
    %v220 = vadd.f32 0.0, %v219
    %v221 = vpop.f32.mrb[0].mxu0
    %v222 = vadd.f32 0.0, %v221
    %v223 = vpop.f32.mrb[0].mxu0
    %v224 = vadd.f32 0.0, %v223
    %v225 = vpop.f32.mrb[0].mxu0
    %v226 = vadd.f32 0.0, %v225
    %227 = vdwg.mxu0
    %228 = vmatprep.subr.bf16.mxu0 %v152
    %229 = vmatpush1.bf16.msra.mxu0 %v151
    %230 = vmatprep.subr.bf16.mxu0 %v156
    %231 = vmatpush1.bf16.msra.mxu0 %v155
    %232 = vmatprep.subr.bf16.mxu0 %v160
    %233 = vmatpush1.bf16.msra.mxu0 %v159
    %234 = vmatprep.subr.bf16.mxu0 %v164
    %235 = vmatpush1.bf16.msra.mxu0 %v163
    %236 = vmatprep.subr.bf16.mxu0 0
    %237 = vmatpush1.bf16.msra.mxu0 0
    %238 = vmatprep.subr.bf16.mxu0 0
    %239 = vmatpush1.bf16.msra.mxu0 0
    %240 = vmatprep.subr.bf16.mxu0 0
    %241 = vmatpush1.bf16.msra.mxu0 0
    %242 = vmatprep.subr.bf16.mxu0 0
    %243 = vmatpush1.bf16.msra.mxu0 0
    %244 = vmatprep.subr.bf16.mxu0 0
    %245 = vmatpush1.bf16.msra.mxu0 0
    %246 = vmatprep.subr.bf16.mxu0 0
    %247 = vmatpush1.bf16.msra.mxu0 0
    %248 = vmatprep.subr.bf16.mxu0 0
    %249 = vmatpush1.bf16.msra.mxu0 0
    %250 = vmatprep.subr.bf16.mxu0 0
    %251 = vmatpush1.bf16.msra.mxu0 0
    %252 = vmatprep.subr.bf16.mxu0 0
    %253 = vmatpush1.bf16.msra.mxu0 0
    %254 = vmatprep.subr.bf16.mxu0 0
    %255 = vmatpush1.bf16.msra.mxu0 0
    %256 = vmatprep.subr.bf16.mxu0 0
    %257 = vmatpush1.bf16.msra.mxu0 0
    %258 = vmatprep.subr.bf16.mxu0 0
    %259 = vmatpush1.bf16.msra.mxu0 0
    %260 = vmatprep.mubr.bf16.mxu0 0
    %261 = vmatmul.mubr.bf16.gmra.mrb[0].mxu0 %v183
    %v262 = vpop.f32.mrb[0].mxu0
    %v263 = vadd.f32 0.0, %v262
    %v264 = vpop.f32.mrb[0].mxu0
    %v265 = vadd.f32 0.0, %v264
    %v266 = vpop.f32.mrb[0].mxu0
    %v267 = vadd.f32 0.0, %v266
    %v268 = vpop.f32.mrb[0].mxu0
    %v269 = vadd.f32 0.0, %v268
    %270 = vdwg.mxu0
    %v271 = vpack.c.bf16 %v224, %v220
    %v272 = vpack.c.bf16 %v226, %v222
    %v273 = vpack.c.bf16 %v267, %v263
    %v274 = vpack.c.bf16 %v269, %v265
    %v279 = vunpack.c.l.b16 %v271
    %v280 = vunpack.c.l.b16 %v272
    %v281 = vunpack.c.l.b16 %v273
    %v282 = vunpack.c.l.b16 %v274
    %v283 = vunpack.c.h.b16 %v271
    %v284 = vunpack.c.h.b16 %v272
    %v285 = vunpack.c.h.b16 %v273
    %v286 = vunpack.c.h.b16 %v274
    %v287 = vpack.c.b16 %v280, %v279
    %v288 = vpack.c.b16 %v282, %v281
    %v289 = vpack.c.b16 %v284, %v283
    %v290 = vpack.c.b16 %v286, %v285
    %295 = vst [vmem:[#allocation5] sm:$0xff] %v287
    %296 = vst [vmem:[#allocation5 + $0x8] sm:$0xff] %v288
    %297 = vst [vmem:[#allocation5 + $0x10] sm:$0xff] %v289
    %298 = vst [vmem:[#allocation5 + $0x18] sm:$0xff] %v290
    // Predicated region
    $region14: #{tpu_custom_call.1} parent=1 // pred_check
      _
    $region15: #{tpu_custom_call.1} parent=1 // pred_check_branch
      %300 = sbr.rel (0) target = $region17
    $region16: #{tpu_custom_call.1} parent=1 // pred_region
      %s302 = ssub.s32 512, 512
      %303 = vsyncadd [#allocation4], %s302
      %s304 = sshll.u32 [#allocation5], 4
      %s305 = int_to_ptr.vmem [resolvable:$true] %s304
      %310 = dma.vmem_to_hbm [thread:$0]  %s305, 512, %s2, [#allocation4], 256, 256, 16
    $region17: #{tpu_custom_call.1} parent=1 // pred_fallthru
      _
    // Predicated region
    $region18: #{tpu_custom_call.1} parent=1 // pred_check
      _
    $region19: #{tpu_custom_call.1} parent=1 // pred_check_branch
      %312 = sbr.rel (0) target = $region21
    $region20: #{tpu_custom_call.1} parent=1 // pred_region
      %313 = dma.done [#allocation4], 512
    $region21: #{tpu_custom_call.1} parent=1 // pred_fallthru
      _
    %314 = vsyncpa [#allocation3], 1
    %315 = vsyncpa [#allocation4], 1

</llo_original>
